<compile_context>
chip_gen: v7x
topology: tpu7x:2x2x1
jax: 0.10.0
libtpu: 0.0.40
codegen_flags: <defaults>
</compile_context>

<pallas_src>
import functools

import jax
import jax.numpy as jnp
from jax.experimental import pallas as pl
from jax.experimental.pallas import tpu as pltpu


# ~2 MiB of f32 per x tile: measured sweet spot (~85% of HBM roofline on v6e)
# while keeping 2x(in)+2x(out) double-buffered tiles (~8 MiB) safely inside
# v5e's 16 MiB scoped-VMEM default and v7x's smaller physical VMEM.
_TARGET_TILE_BYTES = 2 * 1024 * 1024


def _choose_tile(N, C, HW):
    """Pick (n_blk, c_blk, hw_blk) for an (N, C, HW) f32 slab.

    Block dims always satisfy the (8, 128) tiling rule: the channel (sublane)
    block is a multiple of 8 or equal to C, the HW (lane) block is a multiple
    of 128 or equal to HW. Edge blocks that don't divide evenly are handled by
    Pallas masking (the op is purely elementwise, so padded garbage is benign).
    """
    E = _TARGET_TILE_BYTES // 4  # f32 elements per x tile

    if C * HW <= E:
        # A whole (C, HW) image slab fits; batch several images per tile.
        c_blk, hw_blk = C, HW
        n_blk = max(1, min(N, E // (C * HW)))
    elif HW <= E and C >= 8:
        # Full rows, split the channel axis in multiples of 8.
        hw_blk = HW
        c_blk = min(C, max(8, (E // HW) // 8 * 8))
        n_blk = 1
    else:
        # Very large spatial maps (or tiny C): split along the lane axis.
        c_blk = C if C < 8 else 8
        hw_blk = max(128, (E // c_blk) // 128 * 128)
        n_blk = 1

    # v7x megacore: keep at least 2 grid steps along a "parallel" axis so the
    # work shards across both TensorCores (also harmless on v5e/v6e).
    steps = pl.cdiv(N, n_blk) * pl.cdiv(C, c_blk) * pl.cdiv(HW, hw_blk)
    if steps == 1 and N >= 2:
        n_blk = (N + 1) // 2

    return n_blk, c_blk, hw_blk


def _bn_relu_kernel(x_ref, scale_ref, bias_ref, o_ref):
    # x_ref:     (n_blk, c_blk, hw_blk)  block of activations (f32)
    # scale_ref: (c_blk, 1)              folded per-channel BN scale
    # bias_ref:  (c_blk, 1)              folded per-channel BN bias
    x = x_ref[...]
    s = scale_ref[...][None, :, :]   # broadcast over batch and lane dims
    b = bias_ref[...][None, :, :]
    y = x * s + b                    # BatchNorm (eval, folded affine)
    o_ref[...] = jnp.maximum(y, 0.0)  # ReLU


@functools.partial(jax.jit, static_argnames=("eps",))
def batchnorm_relu(x_nchw, gamma, beta, running_mean, running_var, eps=1e-3):
    """Pallas implementation of (eval-mode) BatchNorm2d + ReLU on an NCHW tensor."""
    N, C, H, W = x_nchw.shape
    HW = H * W

    # Fold BN into per-channel scale/bias (plain-JAX glue on tiny (C,) vectors).
    inv_std = jax.lax.rsqrt(running_var.astype(jnp.float32) + eps)
    scale_c = (gamma.astype(jnp.float32) * inv_std).reshape(C, 1)
    bias_c = (beta.astype(jnp.float32)
              - running_mean.astype(jnp.float32) * scale_c[:, 0]).reshape(C, 1)

    # Zero-copy view: NCHW -> (N, C, H*W); channel maps to sublanes, H*W to lanes.
    x3 = x_nchw.reshape(N, C, HW).astype(jnp.float32)

    n_blk, c_blk, hw_blk = _choose_tile(N, C, HW)
    grid = (pl.cdiv(N, n_blk), pl.cdiv(C, c_blk), pl.cdiv(HW, hw_blk))

    out3 = pl.pallas_call(
        _bn_relu_kernel,
        out_shape=jax.ShapeDtypeStruct((N, C, HW), jnp.float32),
        grid=grid,
        in_specs=[
            pl.BlockSpec((n_blk, c_blk, hw_blk), lambda n, c, h: (n, c, h)),
            # scale/bias depend only on the channel block -> effectively
            # resident across the N and HW grid axes; negligible HBM traffic.
            pl.BlockSpec((c_blk, 1), lambda n, c, h: (c, 0)),
            pl.BlockSpec((c_blk, 1), lambda n, c, h: (c, 0)),
        ],
        out_specs=pl.BlockSpec((n_blk, c_blk, hw_blk), lambda n, c, h: (n, c, h)),
        compiler_params=pltpu.CompilerParams(
            dimension_semantics=("parallel", "parallel", "parallel")),
        cost_estimate=pl.CostEstimate(
            flops=2 * N * C * HW,
            transcendentals=0,
            bytes_accessed=4 * (2 * N * C * HW + 2 * C)),
    )(x3, scale_c, bias_c)

    return out3.reshape(N, C, H, W).astype(x_nchw.dtype)


if __name__ == "__main__":
    key = jax.random.PRNGKey(0)
    k_x, k_g, k_b, k_m, k_v = jax.random.split(key, 5)

    # Small shapes consistent with a BatchNorm2d-wrapped ERFNet stage.
    N, C, H, W = 2, 4, 16, 16
    eps = 1e-3  # ERFNet uses eps=0.001 for its BatchNorm2d layers.

    x = jax.random.normal(k_x, (N, C, H, W), dtype=jnp.float32)
    gamma = 1.0 + 0.1 * jax.random.normal(k_g, (C,), dtype=jnp.float32)
    beta = 0.1 * jax.random.normal(k_b, (C,), dtype=jnp.float32)
    running_mean = 0.2 * jax.random.normal(k_m, (C,), dtype=jnp.float32)
    running_var = jnp.abs(1.0 + 0.1 * jax.random.normal(k_v, (C,), dtype=jnp.float32))

    out = batchnorm_relu(x, gamma, beta, running_mean, running_var, eps=eps)
    out = jax.block_until_ready(out)

    # Reference check in plain JAX (eval-mode BN + ReLU).
    inv_std = jax.lax.rsqrt(running_var + eps)
    ref = (x - running_mean[None, :, None, None]) * inv_std[None, :, None, None]
    ref = ref * gamma[None, :, None, None] + beta[None, :, None, None]
    ref = jnp.maximum(ref, 0.0)

    assert out.shape == (N, C, H, W)
    assert jnp.allclose(out, ref, atol=1e-5, rtol=1e-5)

    print("KERNEL_OK")
</pallas_src>

<mosaic_0001>
module attributes {stable_mosaic.version = 11 : i64} {
  func.func @_bn_relu_kernel(%arg0: i32, %arg1: i32, %arg2: i32, %arg3: memref<1x4x256xf32, #tpu.memory_space<vmem>>, %arg4: memref<4x1xf32, #tpu.memory_space<vmem>>, %arg5: memref<4x1xf32, #tpu.memory_space<vmem>>, %arg6: memref<1x4x256xf32, #tpu.memory_space<vmem>>) attributes {dimension_semantics = [#tpu.dimension_semantics<parallel>, #tpu.dimension_semantics<parallel>, #tpu.dimension_semantics<parallel>], iteration_bounds = array<i64: 2, 1, 1>, scalar_prefetch = 0 : i64, scratch_operands = 0 : i64, tpu.core_type = #tpu.core_type<tc>, window_params = [{transform_indices = @transform_0, window_bounds = array<i64: 1, 4, 256>}, {transform_indices = @transform_1, window_bounds = array<i64: 4, 1>}, {transform_indices = @transform_2, window_bounds = array<i64: 4, 1>}, {transform_indices = @transform_3, window_bounds = array<i64: 1, 4, 256>}]} {
    %c0 = arith.constant 0 : index
    %c0_0 = arith.constant 0 : index
    %c0_1 = arith.constant 0 : index
    %0 = vector.load %arg3[%c0, %c0_0, %c0_1] : memref<1x4x256xf32, #tpu.memory_space<vmem>>, vector<1x4x256xf32>
    %c0_2 = arith.constant 0 : index
    %c0_3 = arith.constant 0 : index
    %1 = vector.load %arg4[%c0_2, %c0_3] : memref<4x1xf32, #tpu.memory_space<vmem>>, vector<4x1xf32>
    %2 = vector.shape_cast %1 : vector<4x1xf32> to vector<1x4x1xf32>
    %c0_4 = arith.constant 0 : index
    %c0_5 = arith.constant 0 : index
    %3 = vector.load %arg5[%c0_4, %c0_5] : memref<4x1xf32, #tpu.memory_space<vmem>>, vector<4x1xf32>
    %4 = vector.shape_cast %3 : vector<4x1xf32> to vector<1x4x1xf32>
    %5 = vector.broadcast %2 : vector<1x4x1xf32> to vector<1x4x256xf32>
    %6 = arith.mulf %0, %5 : vector<1x4x256xf32>
    %7 = vector.broadcast %4 : vector<1x4x1xf32> to vector<1x4x256xf32>
    %8 = arith.addf %6, %7 : vector<1x4x256xf32>
    %cst = arith.constant 0.000000e+00 : f32
    %9 = vector.broadcast %cst : f32 to vector<1x4x256xf32>
    %10 = arith.maximumf %8, %9 : vector<1x4x256xf32>
    %c0_6 = arith.constant 0 : index
    %c0_7 = arith.constant 0 : index
    %c0_8 = arith.constant 0 : index
    %11 = vector.load %arg6[%c0_6, %c0_7, %c0_8] : memref<1x4x256xf32, #tpu.memory_space<vmem>>, vector<1x4x256xf32>
    tpu.vector_store %arg6[%c0_6, %c0_7, %c0_8], %10 {strides = array<i32>} : memref<1x4x256xf32, #tpu.memory_space<vmem>>, vector<1x4x256xf32>,
    return
  }
  func.func @transform_0(%arg0: i32, %arg1: i32, %arg2: i32) -> (i32, i32, i32) {
    %c0_i32 = arith.constant 0 : i32
    return %arg0, %arg1, %arg2 : i32, i32, i32
  }
  func.func @transform_1(%arg0: i32, %arg1: i32, %arg2: i32) -> (i32, i32) {
    %c0_i32 = arith.constant 0 : i32
    %c0_i32_0 = arith.constant 0 : i32
    return %arg1, %c0_i32 : i32, i32
  }
  func.func @transform_2(%arg0: i32, %arg1: i32, %arg2: i32) -> (i32, i32) {
    %c0_i32 = arith.constant 0 : i32
    %c0_i32_0 = arith.constant 0 : i32
    return %arg1, %c0_i32 : i32, i32
  }
  func.func @transform_3(%arg0: i32, %arg1: i32, %arg2: i32) -> (i32, i32, i32) {
    %c0_i32 = arith.constant 0 : i32
    return %arg0, %arg1, %arg2 : i32, i32, i32
  }
}

</mosaic_0001>

<llo_original>
// kernel: batchnorm_relu.1
$region0: #{batchnorm_relu.1}
  #allocation0 [shape = 'u32[]', space=smem, size = 0x4, offset = 0x4, fixed_abs, tag = 'smem constant byte address 0x4 - core index']
  #allocation1 [shape = 'u32[144,128]{1,0:T(1,128)}', space=vmem, size = 0x12000, scoped, tag = 'internal scratch']
  %s0 = inlined_call_operand.vmem [shape: f32[2,4,256], index: 0, kind: input, shape index: {}]
  %s1 = inlined_call_operand.vmem [shape: f32[4,1], index: 1, kind: input, shape index: {}]
  %s2 = inlined_call_operand.vmem [shape: f32[4,1], index: 2, kind: input, shape index: {}]
  %s3 = inlined_call_operand.vmem [shape: f32[2,4,256], index: 3, kind: output, shape index: {}]
  %s4 = sld [smem:[#allocation0]]
  $region45: #{batchnorm_relu.1} parent=0
    _
  %s6 = ssub.s32 1, %s4
  %s7 = scalar_select 0, %s6, %s4
  loop: start=0, step=1, limit=4
  $region2: #{batchnorm_relu.1} parent=0 // loop_pre_header
    _
  $region3: #{batchnorm_relu.1} parent=0 // loop_header
    %s9 = sphi 0, %s13
    %p10 = scmp.ge.s32.totalorder %s9, 4
    %s16 = sphi 0, %s35
    %s17 = sphi 0, %s31
    %s18 = sphi 0, %s27
    %s19 = sphi 0, %s16
    %s20 = sphi 0, %s17
    %s21 = sphi 0, %s18
    %s22 = sphi 0, %s19
    %s23 = sphi 0, %s20
    %s24 = sphi 0, %s21
    %s42 = sphi 0, %s44
    %s45 = sphi 0, %s42
    %s46 = sphi 0, %s45
    %s62 = sphi 0, %s46
    %s68 = sphi 0, %s70
    %s71 = sphi 0, %s68
    %s72 = sphi 0, %s71
    %s88 = sphi 0, %s72
    %s94 = sphi 0, %s96
    %s97 = sphi 0, %s94
    %s98 = sphi 0, %s97
    %s114 = sphi 0, %s98
    %s124 = sphi 0, %s126
    %s127 = sphi 0, %s124
    %s128 = sphi 0, %s127
    %s144 = sphi 0, %s128
  $region4: #{batchnorm_relu.1} parent=0 // loop_header_branch
    %12 = sbr.rel (%p10) target = $region8
  $region5: #{batchnorm_relu.1} parent=0 // loop_body
    %s14 = ssub.s32 %s9, 1
    %s15 = ssub.s32 %s9, 2
    %s25 = sadd.s32 1, %s18
    %p26 = scmp.ge.s32.totalorder %s25, 1
    %s27 = scalar_select %p26, 0, %s25
    %s28 = sadd.s32 1, %s17
    %s29 = scalar_select %p26, %s28, %s17
    %p30 = scmp.ge.s32.totalorder %s29, 1
    %s31 = scalar_select %p30, 0, %s29
    %s32 = sadd.s32 1, %s16
    %s33 = scalar_select %p30, %s32, %s16
    %p34 = scmp.ge.s32.totalorder %s33, 2
    %s35 = scalar_select %p34, 0, %s33
    %s36 = ssub.s32 %s16, %s35
    %s37 = ssub.s32 %s17, %s31
    %s38 = sor.u32 %s36, %s37
    %s39 = ssub.s32 %s18, %s27
    %s40 = sor.u32 %s38, %s39
    %p41 = scmp.eq.s32.totalorder %s40, 0
    %s43 = sadd.s32 %s42, 1
    %s44 = scalar_select %p41, %s42, %s43
    %p47 = pneg %p41
    %p48 = scmp.eq.s32.totalorder %s9, 1
    %p49 = por %p47, %p48
    %p50 = scmp.ne.s32.totalorder %s42, %s45
    %p51 = scmp.eq.s32.totalorder %s9, 0
    %p52 = por %p50, %p51
    %p53 = scmp.ne.s32.totalorder %s42, %s45
    %p54 = scmp.eq.s32.totalorder %s14, 1
    %p55 = por %p53, %p54
    %p56 = scmp.ne.s32.totalorder %s45, %s46
    %p57 = scmp.eq.s32.totalorder %s14, 0
    %p58 = por %p56, %p57
    %p59 = scmp.ne.s32.totalorder %s45, %s46
    %p60 = scmp.eq.s32.totalorder %s15, 1
    %p61 = por %p59, %p60
    %p63 = scmp.ne.s32.totalorder %s46, %s62
    %p64 = scmp.eq.s32.totalorder %s15, 0
    %p65 = por %p63, %p64
    %s66 = ssub.s32 %s17, %s31
    %p67 = scmp.eq.s32.totalorder %s66, 0
    %s69 = sadd.s32 %s68, 1
    %s70 = scalar_select %p67, %s68, %s69
    %p73 = pneg %p67
    %p74 = scmp.eq.s32.totalorder %s9, 1
    %p75 = por %p73, %p74
    %p76 = scmp.ne.s32.totalorder %s68, %s71
    %p77 = scmp.eq.s32.totalorder %s9, 0
    %p78 = por %p76, %p77
    %p79 = scmp.ne.s32.totalorder %s68, %s71
    %p80 = scmp.eq.s32.totalorder %s14, 1
    %p81 = por %p79, %p80
    %p82 = scmp.ne.s32.totalorder %s71, %s72
    %p83 = scmp.eq.s32.totalorder %s14, 0
    %p84 = por %p82, %p83
    %p85 = scmp.ne.s32.totalorder %s71, %s72
    %p86 = scmp.eq.s32.totalorder %s15, 1
    %p87 = por %p85, %p86
    %p89 = scmp.ne.s32.totalorder %s72, %s88
    %p90 = scmp.eq.s32.totalorder %s15, 0
    %p91 = por %p89, %p90
    %s92 = ssub.s32 %s17, %s31
    %p93 = scmp.eq.s32.totalorder %s92, 0
    %s95 = sadd.s32 %s94, 1
    %s96 = scalar_select %p93, %s94, %s95
    %p99 = pneg %p93
    %p100 = scmp.eq.s32.totalorder %s9, 1
    %p101 = por %p99, %p100
    %p102 = scmp.ne.s32.totalorder %s94, %s97
    %p103 = scmp.eq.s32.totalorder %s9, 0
    %p104 = por %p102, %p103
    %p105 = scmp.ne.s32.totalorder %s94, %s97
    %p106 = scmp.eq.s32.totalorder %s14, 1
    %p107 = por %p105, %p106
    %p108 = scmp.ne.s32.totalorder %s97, %s98
    %p109 = scmp.eq.s32.totalorder %s14, 0
    %p110 = por %p108, %p109
    %p111 = scmp.ne.s32.totalorder %s97, %s98
    %p112 = scmp.eq.s32.totalorder %s15, 1
    %p113 = por %p111, %p112
    %p115 = scmp.ne.s32.totalorder %s98, %s114
    %p116 = scmp.eq.s32.totalorder %s15, 0
    %p117 = por %p115, %p116
    %s118 = ssub.s32 %s16, %s35
    %s119 = ssub.s32 %s17, %s31
    %s120 = sor.u32 %s118, %s119
    %s121 = ssub.s32 %s18, %s27
    %s122 = sor.u32 %s120, %s121
    %p123 = scmp.eq.s32.totalorder %s122, 0
    %s125 = sadd.s32 %s124, 1
    %s126 = scalar_select %p123, %s124, %s125
    %p129 = pneg %p123
    %p130 = scmp.eq.s32.totalorder %s9, 1
    %p131 = por %p129, %p130
    %p132 = scmp.ne.s32.totalorder %s124, %s127
    %p133 = scmp.eq.s32.totalorder %s9, 0
    %p134 = por %p132, %p133
    %p135 = scmp.ne.s32.totalorder %s124, %s127
    %p136 = scmp.eq.s32.totalorder %s14, 1
    %p137 = por %p135, %p136
    %p138 = scmp.ne.s32.totalorder %s127, %s128
    %p139 = scmp.eq.s32.totalorder %s14, 0
    %p140 = por %p138, %p139
    %p141 = scmp.ne.s32.totalorder %s127, %s128
    %p142 = scmp.eq.s32.totalorder %s15, 1
    %p143 = por %p141, %p142
    %p145 = scmp.ne.s32.totalorder %s128, %s144
    %p146 = scmp.eq.s32.totalorder %s15, 0
    %p147 = por %p145, %p146
    %p148 = scmp.le.s32.totalorder 1, %s9
    %p149 = scmp.lt.s32.totalorder %s9, 3
    %p150 = pnand %p148, %p149
    %p151 = pneg %p150
    // Predicated region
    $region9: #{batchnorm_relu.1} parent=5 // pred_check
      _
    $region10: #{batchnorm_relu.1} parent=5 // pred_check_branch
      %153 = sbr.rel (%p150) target = $region12
    $region11: #{batchnorm_relu.1} parent=5 // pred_region
      %s154 = ssub.s32 %s9, 1
      // Predicated region
      $region13: #{batchnorm_relu.1} parent=11 // pred_check
        %p155 = pneg %p84
      $region14: #{batchnorm_relu.1} parent=11 // pred_check_branch
        %157 = sbr.rel (%p155) target = $region16
      $region15: #{batchnorm_relu.1} parent=11 // pred_region
        %p158 = scmp.lt.s32.totalorder %s20, 0
        %s159 = scalar_select %p158, %s20, 0
        %s160 = smul.addr %s159, 4
        %s161 = scalar_lea.vmem %s1, %s160
      $region16: #{batchnorm_relu.1} parent=11 // pred_fallthru
        _
      // Predicated region
      $region17: #{batchnorm_relu.1} parent=11 // pred_check
        %p162 = pneg %p110
      $region18: #{batchnorm_relu.1} parent=11 // pred_check_branch
        %164 = sbr.rel (%p162) target = $region20
      $region19: #{batchnorm_relu.1} parent=11 // pred_region
        %p165 = scmp.lt.s32.totalorder %s20, 0
        %s166 = scalar_select %p165, %s20, 0
        %s167 = smul.addr %s166, 4
        %s168 = scalar_lea.vmem %s2, %s167
      $region20: #{batchnorm_relu.1} parent=11 // pred_fallthru
        _
    $region12: #{batchnorm_relu.1} parent=5 // pred_fallthru
      _
    %p169 = scmp.lt.s32.totalorder %s9, 2
    // Predicated region
    $region21: #{batchnorm_relu.1} parent=5 // pred_check
      %p170 = pneg %p169
    $region22: #{batchnorm_relu.1} parent=5 // pred_check_branch
      %172 = sbr.rel (%p170) target = $region24
    $region23: #{batchnorm_relu.1} parent=5 // pred_region
      // Predicated region
      $region25: #{batchnorm_relu.1} parent=23 // pred_check
        %p173 = pneg %p52
      $region26: #{batchnorm_relu.1} parent=23 // pred_check_branch
        %175 = sbr.rel (%p173) target = $region28
      $region27: #{batchnorm_relu.1} parent=23 // pred_region
        %s176 = smul.u32 2, %s18
        %p177 = scmp.lt.s32.totalorder %s16, 1
        %s178 = scalar_select %p177, %s16, 1
        %p179 = scmp.lt.s32.totalorder %s17, 0
        %s180 = scalar_select %p179, %s17, 0
        %p181 = scmp.lt.s32.totalorder %s176, 1
        %s182 = scalar_select %p181, %s176, 1
        %s183 = smul.addr %s180, 2
        %s184 = sadd.s32 %s182, %s183
        %s185 = smul.addr %s178, 2
        %s186 = sadd.s32 %s184, %s185
        %s187 = smul.addr %s186, 4
        %s188 = scalar_lea.vmem %s0, %s187
        %s189 = smul.u32 2, %s18
      $region28: #{batchnorm_relu.1} parent=23 // pred_fallthru
        _
    $region24: #{batchnorm_relu.1} parent=5 // pred_fallthru
      _
    %p190 = scmp.le.s32.totalorder 1, %s9
    %p191 = scmp.lt.s32.totalorder %s9, 3
    %p192 = pnand %p190, %p191
    %p193 = pneg %p192
    // Predicated region
    $region29: #{batchnorm_relu.1} parent=5 // pred_check
      _
    $region30: #{batchnorm_relu.1} parent=5 // pred_check_branch
      %195 = sbr.rel (%p192) target = $region32
    $region31: #{batchnorm_relu.1} parent=5 // pred_region
      %s196 = ssub.s32 %s9, 1
      %s197 = smul.u32 2, %s21
      %p198 = scmp.lt.s32.totalorder %s19, 1
      %s199 = scalar_select %p198, %s19, 1
      %p200 = scmp.lt.s32.totalorder %s20, 0
      %s201 = scalar_select %p200, %s20, 0
      %p202 = scmp.lt.s32.totalorder %s197, 1
      %s203 = scalar_select %p202, %s197, 1
      %s204 = smul.addr %s201, 2
      %s205 = sadd.s32 %s203, %s204
      %s206 = smul.addr %s199, 2
      %s207 = sadd.s32 %s205, %s206
      %s208 = smul.addr %s207, 4
      %s209 = scalar_lea.vmem %s0, %s208
      %p210 = pneg %p58
      %p211 = pneg %p55
      %p212 = scmp.lt.s32.totalorder %s20, 0
      %s213 = scalar_select %p212, %s20, 0
      %s214 = smul.addr %s213, 4
      %s215 = scalar_lea.vmem %s1, %s214
      %p216 = pneg %p84
      %p217 = pneg %p81
      %p218 = scmp.lt.s32.totalorder %s20, 0
      %s219 = scalar_select %p218, %s20, 0
      %s220 = smul.addr %s219, 4
      %s221 = scalar_lea.vmem %s2, %s220
      %p222 = pneg %p110
      %p223 = pneg %p107
      %p224 = pneg %p140
      %p225 = pneg %p137
      %s226 = smul.u32 2, %s21
      %p227 = scmp.lt.s32.totalorder %s19, 1
      %s228 = scalar_select %p227, %s19, 1
      %p229 = scmp.lt.s32.totalorder %s20, 0
      %s230 = scalar_select %p229, %s20, 0
      %p231 = scmp.lt.s32.totalorder %s226, 1
      %s232 = scalar_select %p231, %s226, 1
      %s233 = smul.addr %s230, 2
      %s234 = sadd.s32 %s232, %s233
      %s235 = smul.addr %s228, 2
      %s236 = sadd.s32 %s234, %s235
      %s237 = smul.addr %s236, 4
      %s238 = scalar_lea.vmem %s3, %s237
      %s239 = smul.u32 2, %s21
      %p240 = scmp.lt.s32.totalorder %s19, 1
      %s241 = scalar_select %p240, %s19, 1
      %p242 = scmp.lt.s32.totalorder %s20, 0
      %s243 = scalar_select %p242, %s20, 0
      %p244 = scmp.lt.s32.totalorder %s239, 1
      %s245 = scalar_select %p244, %s239, 1
      %s246 = smul.addr %s243, 2
      %s247 = sadd.s32 %s245, %s246
      %s248 = smul.addr %s241, 2
      %s249 = sadd.s32 %s247, %s248
      %s250 = smul.addr %s249, 4
      %s251 = scalar_lea.vmem %s0, %s250
      %s252 = smul.u32 2, %s21
      %p253 = scmp.lt.s32.totalorder %s20, 0
      %s254 = scalar_select %p253, %s20, 0
      %s255 = smul.addr %s254, 4
      %s256 = scalar_lea.vmem %s1, %s255
      %p257 = scmp.lt.s32.totalorder %s20, 0
      %s258 = scalar_select %p257, %s20, 0
      %s259 = smul.addr %s258, 4
      %s260 = scalar_lea.vmem %s2, %s259
      %s261 = smul.u32 2, %s21
      %p262 = scmp.lt.s32.totalorder %s19, 1
      %s263 = scalar_select %p262, %s19, 1
      %p264 = scmp.lt.s32.totalorder %s20, 0
      %s265 = scalar_select %p264, %s20, 0
      %p266 = scmp.lt.s32.totalorder %s261, 1
      %s267 = scalar_select %p266, %s261, 1
      %s268 = smul.addr %s265, 2
      %s269 = sadd.s32 %s267, %s268
      %s270 = smul.addr %s263, 2
      %s271 = sadd.s32 %s269, %s270
      %s272 = smul.addr %s271, 4
      %s273 = scalar_lea.vmem %s3, %s272
      %s274 = smul.u32 2, %s21
      %v275 = vld [vmem:[%s251] sm:$0xff]
      %v276 = vld [vmem:[%s256] sm:$0xf]
      %v277 = vld [vmem:[%s260] sm:$0xf]
      %279 = vset.pattern.permute.xlu0 0
      %280 = vperm.xlu0 %279, %v276
      %v281 = vpop.permute.xlu0 %280
      %v283 = vunpack.c.l.s4 839922192
      %v284 = vunpack.c.0.s8 %v283
      %v285 = vlaneseq
      %v286 = vshrl.u32 %v285, 7
      %v287 = vsub.s32 %v284, %v286
      %v288 = vrot.slane %v281, %v287
      %v290 = vmul.f32 %v275, %v288
      %292 = vset.pattern.permute.xlu0 0
      %293 = vperm.xlu0 %292, %v277
      %v294 = vpop.permute.xlu0 %293
      %v296 = vunpack.c.l.s4 839922192
      %v297 = vunpack.c.0.s8 %v296
      %v298 = vlaneseq
      %v299 = vshrl.u32 %v298, 7
      %v300 = vsub.s32 %v297, %v299
      %v301 = vrot.slane %v294, %v300
      %v303 = vadd.f32 %v290, %v301
      %v304 = vmax.f32 %v303, 0.0
      %305 = vst [vmem:[%s273] sm:$0xff] %v304
      %s306 = smul.u32 2, %s21
      %p307 = scmp.lt.s32.totalorder %s19, 1
      %s308 = scalar_select %p307, %s19, 1
      %p309 = scmp.lt.s32.totalorder %s20, 0
      %s310 = scalar_select %p309, %s20, 0
      %p311 = scmp.lt.s32.totalorder %s306, 1
      %s312 = scalar_select %p311, %s306, 1
      %s313 = smul.addr %s310, 2
      %s314 = sadd.s32 %s312, %s313
      %s315 = smul.addr %s308, 2
      %s316 = sadd.s32 %s314, %s315
      %s317 = smul.addr %s316, 4
      %s318 = scalar_lea.vmem %s3, %s317
      // Predicated region
      $region33: #{batchnorm_relu.1} parent=31 // pred_check
        %p319 = pneg %p137
      $region34: #{batchnorm_relu.1} parent=31 // pred_check_branch
        %321 = sbr.rel (%p319) target = $region36
      $region35: #{batchnorm_relu.1} parent=31 // pred_region
        %s322 = smul.u32 2, %s21
      $region36: #{batchnorm_relu.1} parent=31 // pred_fallthru
        _
    $region32: #{batchnorm_relu.1} parent=5 // pred_fallthru
      _
    %p323 = scmp.le.s32.totalorder 2, %s9
    // Predicated region
    $region37: #{batchnorm_relu.1} parent=5 // pred_check
      %p324 = pneg %p323
    $region38: #{batchnorm_relu.1} parent=5 // pred_check_branch
      %326 = sbr.rel (%p324) target = $region40
    $region39: #{batchnorm_relu.1} parent=5 // pred_region
      %s327 = ssub.s32 %s9, 2
      // Predicated region
      $region41: #{batchnorm_relu.1} parent=39 // pred_check
        %p328 = pneg %p143
      $region42: #{batchnorm_relu.1} parent=39 // pred_check_branch
        %330 = sbr.rel (%p328) target = $region44
      $region43: #{batchnorm_relu.1} parent=39 // pred_region
        %s331 = smul.u32 2, %s24
        %p332 = scmp.lt.s32.totalorder %s22, 1
        %s333 = scalar_select %p332, %s22, 1
        %p334 = scmp.lt.s32.totalorder %s23, 0
        %s335 = scalar_select %p334, %s23, 0
        %p336 = scmp.lt.s32.totalorder %s331, 1
        %s337 = scalar_select %p336, %s331, 1
        %s338 = smul.addr %s335, 2
        %s339 = sadd.s32 %s337, %s338
        %s340 = smul.addr %s333, 2
        %s341 = sadd.s32 %s339, %s340
        %s342 = smul.addr %s341, 4
        %s343 = scalar_lea.vmem %s3, %s342
      $region44: #{batchnorm_relu.1} parent=39 // pred_fallthru
        _
    $region40: #{batchnorm_relu.1} parent=5 // pred_fallthru
      _
  $region6: #{batchnorm_relu.1} parent=0 // loop_footer
    %s13 = sadd.s32 1, %s9
  $region7: #{batchnorm_relu.1} parent=0 // loop_footer_branch
    %8 = sbr.rel target = $region3
  $region8: #{batchnorm_relu.1} parent=0 // loop_exit
    _

</llo_original>
